<compile_context>
chip_gen: v7x
topology: tpu7x:2x2x1
jax: 0.10.0
libtpu: 0.0.40
codegen_flags: <defaults>
</compile_context>

<pallas_src>
import math

import numpy as np
import jax
import jax.numpy as jnp
from jax.experimental import pallas as pl
from jax.experimental.pallas import tpu as pltpu


# ------------------------------ tile planning -------------------------------

def _round_up(x, m):
    return ((x + m - 1) // m) * m


def _pick_tile(dim, target, align):
    """Largest multiple of `align` that divides `dim` and is <= target,
    else the full dim (full-extent blocks always satisfy the (8,128) rule)."""
    if dim <= target:
        return dim
    if dim % align == 0:
        t = (target // align) * align
        while t >= align:
            if dim % t == 0:
                return t
            t -= align
    return dim


def _plan_tiles(M, hidden, internal, out_itemsize,
                tm_target=512, tj_target=512, vmem_budget=44 << 20):
    """Pick (tm, M_pad, tj) and estimate the double-buffered VMEM working set.

    Shrinks tj, then tm, until the estimate fits `vmem_budget` so one config
    is safe across v5e / v6e / v7x (v7x: 64 MiB physical VMEM)."""
    while True:
        if M <= tm_target:
            M_pad = max(_round_up(M, 8), 8)
            tm = M_pad
        else:
            tm = tm_target
            M_pad = _round_up(M, tm)
        tj = _pick_tile(internal, tj_target, 128)
        vmem = (2 * tm * hidden * 2                  # x tile (bf16), double-buffered
                + 4 * hidden * tj * 2                # WgT + WuT tiles, double-buffered
                + 2 * tj * hidden * 2                # WdT tile, double-buffered
                + 2 * tm * hidden * out_itemsize     # output tile, double-buffered
                + tm * hidden * 4)                   # f32 accumulator scratch
        if vmem <= vmem_budget:
            return tm, M_pad, tj, vmem
        if tj > 128 and tj_target > 128:
            tj_target = max(128, tj_target // 2)
        elif M > 128 and tm_target > 128:
            tm_target = max(128, tm_target // 2)
        else:
            return tm, M_pad, tj, vmem


# ------------------------------ Pallas kernel --------------------------------

def _ffn_fused_kernel(x_ref, wg_ref, wu_ref, wd_ref, o_ref, acc_ref):
    """One (i, j) grid step of the fused SwiGLU FFN.

    x_ref : (tm, hidden)   bf16   (resident across the j axis)
    wg_ref: (hidden, tj)   bf16   pre-transposed gate weight tile
    wu_ref: (hidden, tj)   bf16   pre-transposed up weight tile
    wd_ref: (tj, hidden)   bf16   pre-transposed down weight tile
    o_ref : (tm, hidden)          output tile (resident across j)
    acc_ref: (tm, hidden)  f32    down-projection accumulator
    """
    j = pl.program_id(1)

    @pl.when(j == 0)
    def _init():
        acc_ref[...] = jnp.zeros_like(acc_ref)

    x = x_ref[...]                                                      # (tm, hidden)
    g = jnp.dot(x, wg_ref[...], preferred_element_type=jnp.float32)    # (tm, tj) f32
    u = jnp.dot(x, wu_ref[...], preferred_element_type=jnp.float32)    # (tm, tj) f32
    # silu(g) * u = g * sigmoid(g) * u ;  exp and reciprocal both go to the EUP.
    h = (g * u * pl.reciprocal(1.0 + jnp.exp(-g), approx=True)).astype(wd_ref.dtype)
    acc_ref[...] += jnp.dot(h, wd_ref[...], preferred_element_type=jnp.float32)

    @pl.when(j == pl.num_programs(1) - 1)
    def _finalize():
        o_ref[...] = acc_ref[...].astype(o_ref.dtype)


# --------------------------------- wrappers ----------------------------------

def prepare_params(params, compute_dtype=jnp.bfloat16):
    """One-time weight preparation (do at load time, NOT per forward):
    cast to bf16 and pre-transpose to (K, N) layout so the kernel runs plain
    (tm, K) @ (K, tn) contractions with no per-tile transpose and no per-call
    f32->bf16 weight traffic."""
    return {
        "gate_proj_t": jnp.asarray(params["gate_proj"]).T.astype(compute_dtype),  # (hidden, internal)
        "up_proj_t":   jnp.asarray(params["up_proj"]).T.astype(compute_dtype),    # (hidden, internal)
        "down_proj_t": jnp.asarray(params["down_proj"]).T.astype(compute_dtype),  # (internal, hidden)
    }


def feed_forward(prepared, x, *, out_dtype=None, tm_target=512, tj_target=512):
    """FeedForward forward pass.  x: (B, S, hidden) -> (B, S, hidden)."""
    wg_t = prepared["gate_proj_t"]
    wu_t = prepared["up_proj_t"]
    wd_t = prepared["down_proj_t"]
    compute_dtype = wg_t.dtype
    # Output dtype: pass out_dtype=jnp.bfloat16 to halve the final HBM write
    # when the consumer allows it; default matches the input dtype.
    out_dtype = x.dtype if out_dtype is None else out_dtype

    B, S, hidden = x.shape
    internal = wg_t.shape[1]
    M = B * S
    x2d = x.reshape(M, hidden).astype(compute_dtype)

    tm, M_pad, tj, vmem_est = _plan_tiles(
        M, hidden, internal, jnp.dtype(out_dtype).itemsize,
        tm_target=tm_target, tj_target=tj_target)
    if M_pad != M:
        x2d = jnp.pad(x2d, ((0, M_pad - M), (0, 0)))

    grid = (M_pad // tm, internal // tj)
    vmem_limit = int(min(max(vmem_est + (8 << 20), 32 << 20), 96 << 20))

    out = pl.pallas_call(
        _ffn_fused_kernel,
        out_shape=jax.ShapeDtypeStruct((M_pad, hidden), out_dtype),
        grid_spec=pltpu.PrefetchScalarGridSpec(
            num_scalar_prefetch=0,
            grid=grid,
            in_specs=[
                pl.BlockSpec((tm, hidden), lambda i, j: (i, 0)),   # x (resident over j)
                pl.BlockSpec((hidden, tj), lambda i, j: (0, j)),   # Wg^T
                pl.BlockSpec((hidden, tj), lambda i, j: (0, j)),   # Wu^T
                pl.BlockSpec((tj, hidden), lambda i, j: (j, 0)),   # Wd^T
            ],
            out_specs=pl.BlockSpec((tm, hidden), lambda i, j: (i, 0)),
            scratch_shapes=[pltpu.VMEM((tm, hidden), jnp.float32)],
        ),
        compiler_params=pltpu.CompilerParams(
            dimension_semantics=("parallel", "arbitrary"),
            vmem_limit_bytes=vmem_limit),
    )(x2d, wg_t, wu_t, wd_t)

    if M_pad != M:
        out = out[:M]
    return out.reshape(B, S, hidden)


# ------------------------------- pure-JAX ref ---------------------------------

def feed_forward_ref(prepared, x):
    """Reference in f32 using the same (bf16, pre-transposed) weights."""
    wg_t = prepared["gate_proj_t"].astype(jnp.float32)
    wu_t = prepared["up_proj_t"].astype(jnp.float32)
    wd_t = prepared["down_proj_t"].astype(jnp.float32)
    g = x @ wg_t
    u = x @ wu_t
    h = g * jax.nn.sigmoid(g) * u
    return h @ wd_t


# ----------------------------------- main -------------------------------------

if __name__ == "__main__":
    key = jax.random.PRNGKey(0)

    def run_case(B, S, hidden, internal, tm_target, tj_target, subkey,
                 rtol=2e-2, atol=2e-2):
        ks = jax.random.split(subkey, 4)
        params = {
            "gate_proj": jax.random.normal(ks[0], (internal, hidden), jnp.float32)
                         * (1.0 / math.sqrt(hidden)),
            "up_proj":   jax.random.normal(ks[1], (internal, hidden), jnp.float32)
                         * (1.0 / math.sqrt(hidden)),
            "down_proj": jax.random.normal(ks[2], (hidden, internal), jnp.float32)
                         * (1.0 / math.sqrt(internal)),
        }
        x = jax.random.normal(ks[3], (B, S, hidden), jnp.float32)
        prepared = prepare_params(params)           # one-time weight prep
        out = feed_forward(prepared, x, tm_target=tm_target, tj_target=tj_target)
        jax.block_until_ready(out)
        ref = feed_forward_ref(prepared, x)
        np.testing.assert_allclose(np.asarray(out), np.asarray(ref),
                                   rtol=rtol, atol=atol)

    # Small module-consistent shapes (full-extent blocks, 1x1 grid).
    run_case(B=2, S=8, hidden=32, internal=64,
             tm_target=512, tj_target=512, subkey=jax.random.fold_in(key, 0))

    # Larger shapes with forced small tiles so the multi-step grid
    # (init / accumulate / finalize along the internal axis) and the
    # ragged-M padding path are actually exercised.
    run_case(B=2, S=96, hidden=256, internal=512,
             tm_target=128, tj_target=128, subkey=jax.random.fold_in(key, 1),
             rtol=3e-2, atol=3e-2)

    print("KERNEL_OK")
</pallas_src>

<mosaic_0001>
module attributes {stable_mosaic.version = 11 : i64} {
  func.func @_ffn_fused_kernel(%arg0: i32, %arg1: i32, %arg2: memref<16x32xbf16, #tpu.memory_space<vmem>>, %arg3: memref<32x64xbf16, #tpu.memory_space<vmem>>, %arg4: memref<32x64xbf16, #tpu.memory_space<vmem>>, %arg5: memref<64x32xbf16, #tpu.memory_space<vmem>>, %arg6: memref<16x32xf32, #tpu.memory_space<vmem>>, %arg7: memref<16x32xf32, #tpu.memory_space<vmem>>) attributes {dimension_semantics = [#tpu.dimension_semantics<parallel>, #tpu.dimension_semantics<arbitrary>], iteration_bounds = array<i64: 1, 1>, scalar_prefetch = 0 : i64, scratch_operands = 1 : i64, tpu.core_type = #tpu.core_type<tc>, window_params = [{transform_indices = @transform_0, window_bounds = array<i64: 16, 32>}, {transform_indices = @transform_1, window_bounds = array<i64: 32, 64>}, {transform_indices = @transform_2, window_bounds = array<i64: 32, 64>}, {transform_indices = @transform_3, window_bounds = array<i64: 64, 32>}, {transform_indices = @transform_4, window_bounds = array<i64: 16, 32>}]} {
    %c0_i32 = arith.constant 0 : i32
    %0 = arith.cmpi eq, %arg1, %c0_i32 : i32
    %1 = arith.extui %0 : i1 to i32
    %c0_i32_0 = arith.constant 0 : i32
    %2 = arith.cmpi ne, %1, %c0_i32_0 : i32
    scf.if %2 {
      %cst_18 = arith.constant 0.000000e+00 : f32
      %25 = vector.broadcast %cst_18 : f32 to vector<16x32xf32>
      %c0_19 = arith.constant 0 : index
      %c0_20 = arith.constant 0 : index
      %26 = vector.load %arg7[%c0_19, %c0_20] : memref<16x32xf32, #tpu.memory_space<vmem>>, vector<16x32xf32>
      tpu.vector_store %arg7[%c0_19, %c0_20], %25 {strides = array<i32>} : memref<16x32xf32, #tpu.memory_space<vmem>>, vector<16x32xf32>,
    } else {
    }
    %c0 = arith.constant 0 : index
    %c0_1 = arith.constant 0 : index
    %3 = vector.load %arg2[%c0, %c0_1] : memref<16x32xbf16, #tpu.memory_space<vmem>>, vector<16x32xbf16>
    %c0_2 = arith.constant 0 : index
    %c0_3 = arith.constant 0 : index
    %4 = vector.load %arg3[%c0_2, %c0_3] : memref<32x64xbf16, #tpu.memory_space<vmem>>, vector<32x64xbf16>
    %cst = arith.constant dense<0.000000e+00> : vector<16x64xf32>
    %5 = tpu.matmul %3, %4, %cst {dimension_numbers = #tpu.dot_dimension_numbers<[1], [0], [0], [1], [0, 0, 1, 1], [], []>} : vector<16x32xbf16>, vector<32x64xbf16>, vector<16x64xf32> -> vector<16x64xf32>
    %c0_4 = arith.constant 0 : index
    %c0_5 = arith.constant 0 : index
    %6 = vector.load %arg4[%c0_4, %c0_5] : memref<32x64xbf16, #tpu.memory_space<vmem>>, vector<32x64xbf16>
    %cst_6 = arith.constant dense<0.000000e+00> : vector<16x64xf32>
    %7 = tpu.matmul %3, %6, %cst_6 {dimension_numbers = #tpu.dot_dimension_numbers<[1], [0], [0], [1], [0, 0, 1, 1], [], []>} : vector<16x32xbf16>, vector<32x64xbf16>, vector<16x64xf32> -> vector<16x64xf32>
    %8 = arith.mulf %5, %7 : vector<16x64xf32>
    %cst_7 = arith.constant 0.000000e+00 : f32
    %9 = vector.broadcast %cst_7 : f32 to vector<16x64xf32>
    %10 = arith.subf %9, %5 : vector<16x64xf32>
    %11 = math.exp %10 : vector<16x64xf32>
    %cst_8 = arith.constant 1.000000e+00 : f32
    %12 = vector.broadcast %cst_8 : f32 to vector<16x64xf32>
    %13 = arith.addf %12, %11 : vector<16x64xf32>
    %14 = tpu.reciprocal %13 {approx = true} : vector<16x64xf32> -> vector<16x64xf32>
    %15 = arith.mulf %8, %14 : vector<16x64xf32>
    %16 = arith.truncf %15 : vector<16x64xf32> to vector<16x64xbf16>
    %c0_9 = arith.constant 0 : index
    %c0_10 = arith.constant 0 : index
    %17 = vector.load %arg7[%c0_9, %c0_10] : memref<16x32xf32, #tpu.memory_space<vmem>>, vector<16x32xf32>
    %c0_11 = arith.constant 0 : index
    %c0_12 = arith.constant 0 : index
    %18 = vector.load %arg5[%c0_11, %c0_12] : memref<64x32xbf16, #tpu.memory_space<vmem>>, vector<64x32xbf16>
    %cst_13 = arith.constant dense<0.000000e+00> : vector<16x32xf32>
    %19 = tpu.matmul %16, %18, %cst_13 {dimension_numbers = #tpu.dot_dimension_numbers<[1], [0], [0], [1], [0, 0, 1, 1], [], []>} : vector<16x64xbf16>, vector<64x32xbf16>, vector<16x32xf32> -> vector<16x32xf32>
    %20 = arith.addf %17, %19 : vector<16x32xf32>
    %c0_14 = arith.constant 0 : index
    %c0_15 = arith.constant 0 : index
    %21 = vector.load %arg7[%c0_14, %c0_15] : memref<16x32xf32, #tpu.memory_space<vmem>>, vector<16x32xf32>
    tpu.vector_store %arg7[%c0_14, %c0_15], %20 {strides = array<i32>} : memref<16x32xf32, #tpu.memory_space<vmem>>, vector<16x32xf32>,
    %c0_i32_16 = arith.constant 0 : i32
    %22 = arith.cmpi eq, %arg1, %c0_i32_16 : i32
    %23 = arith.extui %22 : i1 to i32
    %c0_i32_17 = arith.constant 0 : i32
    %24 = arith.cmpi ne, %23, %c0_i32_17 : i32
    scf.if %24 {
      %c0_18 = arith.constant 0 : index
      %c0_19 = arith.constant 0 : index
      %25 = vector.load %arg7[%c0_18, %c0_19] : memref<16x32xf32, #tpu.memory_space<vmem>>, vector<16x32xf32>
      %c0_20 = arith.constant 0 : index
      %c0_21 = arith.constant 0 : index
      %26 = vector.load %arg6[%c0_20, %c0_21] : memref<16x32xf32, #tpu.memory_space<vmem>>, vector<16x32xf32>
      tpu.vector_store %arg6[%c0_20, %c0_21], %25 {strides = array<i32>} : memref<16x32xf32, #tpu.memory_space<vmem>>, vector<16x32xf32>,
    } else {
    }
    return
  }
  func.func @transform_0(%arg0: i32, %arg1: i32) -> (i32, i32) {
    %c0_i32 = arith.constant 0 : i32
    %c0_i32_0 = arith.constant 0 : i32
    return %arg0, %c0_i32 : i32, i32
  }
  func.func @transform_1(%arg0: i32, %arg1: i32) -> (i32, i32) {
    %c0_i32 = arith.constant 0 : i32
    %c0_i32_0 = arith.constant 0 : i32
    return %c0_i32, %arg1 : i32, i32
  }
  func.func @transform_2(%arg0: i32, %arg1: i32) -> (i32, i32) {
    %c0_i32 = arith.constant 0 : i32
    %c0_i32_0 = arith.constant 0 : i32
    return %c0_i32, %arg1 : i32, i32
  }
  func.func @transform_3(%arg0: i32, %arg1: i32) -> (i32, i32) {
    %c0_i32 = arith.constant 0 : i32
    %c0_i32_0 = arith.constant 0 : i32
    return %arg1, %c0_i32 : i32, i32
  }
  func.func @transform_4(%arg0: i32, %arg1: i32) -> (i32, i32) {
    %c0_i32 = arith.constant 0 : i32
    %c0_i32_0 = arith.constant 0 : i32
    return %arg0, %c0_i32 : i32, i32
  }
}

</mosaic_0001>

<llo_original>
// kernel: tpu_custom_call.1
$region0: #{tpu_custom_call.1}
  #allocation0 [shape = 'u32[]', space=smem, size = 0x4, offset = 0x4, fixed_abs, tag = 'smem constant byte address 0x4 - core index']
  #allocation1 [shape = 'u32[144,128]{1,0:T(1,128)}', space=vmem, size = 0x12000, scoped, tag = 'internal scratch']
  #allocation2 [shape = 'f32[16,32]{1,0:T(8,128)}', space=vmem, size = 0x2000, scoped, tag = 'scratch operand']
  %s0 = inlined_call_operand.vmem [shape: bf16[16,32], index: 0, kind: input, shape index: {}]
  %s1 = inlined_call_operand.vmem [shape: bf16[32,64], index: 1, kind: input, shape index: {}]
  %s2 = inlined_call_operand.vmem [shape: bf16[32,64], index: 2, kind: input, shape index: {}]
  %s3 = inlined_call_operand.vmem [shape: bf16[64,32], index: 3, kind: input, shape index: {}]
  %s4 = inlined_call_operand.hbm [shape: f32[16,32], index: 4, kind: output, shape index: {}]
  %s5 = sld [smem:[#allocation0]]
  $region34: #{tpu_custom_call.1} parent=0
    _
  %s7 = ssub.s32 1, %s5
  %s8 = scalar_select 0, %s7, %s5
  $region1: #{tpu_custom_call.1} parent=0
    #allocation3 [shape = 'u8[8192]{0}', space=vmem, size = 0x2000, scoped, tag = 'output window, operand 0, single buffered']
    #allocation4 [shape = 's32[1]{0}', space=sflag, size = 0x4, scoped, tag = 'scoped memory for tpu_custom_call.1']
    %9 = vsyncpa [#allocation4], 0
    // Predicated region
    $region2: #{tpu_custom_call.1} parent=1 // pred_check
      _
    $region3: #{tpu_custom_call.1} parent=1 // pred_check_branch
      %11 = sbr.rel (0) target = $region5
    $region4: #{tpu_custom_call.1} parent=1 // pred_region
      _
    $region5: #{tpu_custom_call.1} parent=1 // pred_fallthru
      _
    // Predicated region
    $region6: #{tpu_custom_call.1} parent=1 // pred_check
      _
    $region7: #{tpu_custom_call.1} parent=1 // pred_check_branch
      %13 = sbr.rel (0) target = $region9
    $region8: #{tpu_custom_call.1} parent=1 // pred_region
      _
    $region9: #{tpu_custom_call.1} parent=1 // pred_fallthru
      _
    // Predicated region
    $region10: #{tpu_custom_call.1} parent=1 // pred_check
      _
    $region11: #{tpu_custom_call.1} parent=1 // pred_check_branch
      %15 = sbr.rel (0) target = $region13
    $region12: #{tpu_custom_call.1} parent=1 // pred_region
      _
    $region13: #{tpu_custom_call.1} parent=1 // pred_fallthru
      _
    // Predicated region
    $region14: #{tpu_custom_call.1} parent=1 // pred_check
      _
    $region15: #{tpu_custom_call.1} parent=1 // pred_check_branch
      %17 = sbr.rel (0) target = $region17
    $region16: #{tpu_custom_call.1} parent=1 // pred_region
      _
    $region17: #{tpu_custom_call.1} parent=1 // pred_fallthru
      _
    %p19 = scmp.eq.s32.totalorder 0, 0
    // Predicated region
    $region18: #{tpu_custom_call.1} parent=1 // pred_check
      %p20 = pneg %p19
    $region19: #{tpu_custom_call.1} parent=1 // pred_check_branch
      %22 = sbr.rel (%p20) target = $region21
    $region20: #{tpu_custom_call.1} parent=1 // pred_region
      %vm23 = vcmask 261120
      %24 = vst.msk [vmem:[#allocation2] sm:$0xff] %vm23, 0.0
      %25 = vst.msk [vmem:[#allocation2 + $0x8] sm:$0xff] %vm23, 0.0
    $region21: #{tpu_custom_call.1} parent=1 // pred_fallthru
      _
    %v26 = vld [vmem:[%s0] sm:$0xf]
    %v27 = vld [vmem:[%s0 + $0x4] sm:$0xf]
    %v28 = vld [vmem:[%s1] sm:$0xf]
    %v29 = vld [vmem:[%s1 + $0x4] sm:$0xf]
    %v30 = vld [vmem:[%s1 + $0x8] sm:$0xf]
    %v31 = vld [vmem:[%s1 + $0xc] sm:$0xf]
    %v34 = vunpack.c.l.b16 %v26
    %v35 = vunpack.c.l.b16 %v27
    %v36 = vpack.c.b16 %v35, %v34
    %v41 = vunpack.c.l.b16 %v28
    %v42 = vunpack.c.l.b16 %v29
    %v43 = vunpack.c.l.b16 %v30
    %v44 = vunpack.c.l.b16 %v31
    %v45 = vpack.c.b16 %v42, %v41
    %v46 = vpack.c.b16 %v44, %v43
    %vm49 = vcmask 261120
    %v51 = vsel %vm49, %v36, 0
    %53 = vmatprep.subr.bf16.mxu0 0
    %54 = vmatpush1.bf16.msra.mxu0 %v45
    %55 = vmatprep.subr.bf16.mxu0 0
    %56 = vmatpush1.bf16.msra.mxu0 %v46
    %57 = vmatprep.subr.bf16.mxu0 0
    %58 = vmatpush1.bf16.msra.mxu0 0
    %59 = vmatprep.subr.bf16.mxu0 0
    %60 = vmatpush1.bf16.msra.mxu0 0
    %61 = vmatprep.subr.bf16.mxu0 0
    %62 = vmatpush1.bf16.msra.mxu0 0
    %63 = vmatprep.subr.bf16.mxu0 0
    %64 = vmatpush1.bf16.msra.mxu0 0
    %65 = vmatprep.subr.bf16.mxu0 0
    %66 = vmatpush1.bf16.msra.mxu0 0
    %67 = vmatprep.subr.bf16.mxu0 0
    %68 = vmatpush1.bf16.msra.mxu0 0
    %69 = vmatprep.subr.bf16.mxu0 0
    %70 = vmatpush1.bf16.msra.mxu0 0
    %71 = vmatprep.subr.bf16.mxu0 0
    %72 = vmatpush1.bf16.msra.mxu0 0
    %73 = vmatprep.subr.bf16.mxu0 0
    %74 = vmatpush1.bf16.msra.mxu0 0
    %75 = vmatprep.subr.bf16.mxu0 0
    %76 = vmatpush1.bf16.msra.mxu0 0
    %77 = vmatprep.subr.bf16.mxu0 0
    %78 = vmatpush1.bf16.msra.mxu0 0
    %79 = vmatprep.subr.bf16.mxu0 0
    %80 = vmatpush1.bf16.msra.mxu0 0
    %81 = vmatprep.subr.bf16.mxu0 0
    %82 = vmatpush1.bf16.msra.mxu0 0
    %83 = vmatprep.subr.bf16.mxu0 0
    %84 = vmatpush1.bf16.msra.mxu0 0
    %85 = vmatprep.mubr.bf16.mxu0 0
    %86 = vmatmul.mubr.bf16.gmra.mrb[0].mxu0 %v51
    %v87 = vpop.f32.mrb[0].mxu0
    %v88 = vadd.f32 0.0, %v87
    %v89 = vpop.f32.mrb[0].mxu0
    %v90 = vpop.f32.mrb[0].mxu0
    %v91 = vadd.f32 0.0, %v90
    %v92 = vpop.f32.mrb[0].mxu0
    %93 = vdwg.mxu0
    %v94 = vld [vmem:[%s2] sm:$0xf]
    %v95 = vld [vmem:[%s2 + $0x4] sm:$0xf]
    %v96 = vld [vmem:[%s2 + $0x8] sm:$0xf]
    %v97 = vld [vmem:[%s2 + $0xc] sm:$0xf]
    %v102 = vunpack.c.l.b16 %v94
    %v103 = vunpack.c.l.b16 %v95
    %v104 = vunpack.c.l.b16 %v96
    %v105 = vunpack.c.l.b16 %v97
    %v106 = vpack.c.b16 %v103, %v102
    %v107 = vpack.c.b16 %v105, %v104
    %110 = vmatprep.subr.bf16.mxu0 0
    %111 = vmatpush1.bf16.msra.mxu0 %v106
    %112 = vmatprep.subr.bf16.mxu0 0
    %113 = vmatpush1.bf16.msra.mxu0 %v107
    %114 = vmatprep.subr.bf16.mxu0 0
    %115 = vmatpush1.bf16.msra.mxu0 0
    %116 = vmatprep.subr.bf16.mxu0 0
    %117 = vmatpush1.bf16.msra.mxu0 0
    %118 = vmatprep.subr.bf16.mxu0 0
    %119 = vmatpush1.bf16.msra.mxu0 0
    %120 = vmatprep.subr.bf16.mxu0 0
    %121 = vmatpush1.bf16.msra.mxu0 0
    %122 = vmatprep.subr.bf16.mxu0 0
    %123 = vmatpush1.bf16.msra.mxu0 0
    %124 = vmatprep.subr.bf16.mxu0 0
    %125 = vmatpush1.bf16.msra.mxu0 0
    %126 = vmatprep.subr.bf16.mxu0 0
    %127 = vmatpush1.bf16.msra.mxu0 0
    %128 = vmatprep.subr.bf16.mxu0 0
    %129 = vmatpush1.bf16.msra.mxu0 0
    %130 = vmatprep.subr.bf16.mxu0 0
    %131 = vmatpush1.bf16.msra.mxu0 0
    %132 = vmatprep.subr.bf16.mxu0 0
    %133 = vmatpush1.bf16.msra.mxu0 0
    %134 = vmatprep.subr.bf16.mxu0 0
    %135 = vmatpush1.bf16.msra.mxu0 0
    %136 = vmatprep.subr.bf16.mxu0 0
    %137 = vmatpush1.bf16.msra.mxu0 0
    %138 = vmatprep.subr.bf16.mxu0 0
    %139 = vmatpush1.bf16.msra.mxu0 0
    %140 = vmatprep.subr.bf16.mxu0 0
    %141 = vmatpush1.bf16.msra.mxu0 0
    %142 = vmatprep.mubr.bf16.mxu0 0
    %143 = vmatmul.mubr.bf16.gmra.mrb[0].mxu0 %v51
    %v144 = vpop.f32.mrb[0].mxu0
    %v145 = vadd.f32 0.0, %v144
    %v146 = vpop.f32.mrb[0].mxu0
    %v147 = vpop.f32.mrb[0].mxu0
    %v148 = vadd.f32 0.0, %v147
    %v149 = vpop.f32.mrb[0].mxu0
    %150 = vdwg.mxu0
    %v151 = vmul.f32 %v88, %v145
    %v152 = vmul.f32 %v91, %v148
    %v153 = vsub.f32 0.0, %v88
    %v154 = vsub.f32 0.0, %v91
    %v155 = vmul.f32 %v153, 1.442695
    %v156 = vpow.pop %v155
    %v157 = vmul.f32 %v154, 1.442695
    %v158 = vpow.pop %v157
    %v159 = vadd.f32 %v156, 1.0
    %v160 = vadd.f32 %v158, 1.0
    %v161 = vrcp.pop %v159
    %v162 = vrcp.pop %v160
    %v163 = vmul.f32 %v151, %v161
    %v164 = vmul.f32 %v152, %v162
    %v165 = vpack.c.bf16 %v164, %v163
    %v166 = vld [vmem:[#allocation2] sm:$0xff]
    %v167 = vld [vmem:[#allocation2 + $0x8] sm:$0xff]
    %v168 = vld [vmem:[%s3] sm:$0xf]
    %v169 = vld [vmem:[%s3 + $0x4] sm:$0xf]
    %v170 = vld [vmem:[%s3 + $0x8] sm:$0xf]
    %v171 = vld [vmem:[%s3 + $0xc] sm:$0xf]
    %v172 = vld [vmem:[%s3 + $0x10] sm:$0xf]
    %v173 = vld [vmem:[%s3 + $0x14] sm:$0xf]
    %v174 = vld [vmem:[%s3 + $0x18] sm:$0xf]
    %v175 = vld [vmem:[%s3 + $0x1c] sm:$0xf]
    %v184 = vunpack.c.l.b16 %v168
    %v185 = vunpack.c.l.b16 %v169
    %v186 = vunpack.c.l.b16 %v170
    %v187 = vunpack.c.l.b16 %v171
    %v188 = vunpack.c.l.b16 %v172
    %v189 = vunpack.c.l.b16 %v173
    %v190 = vunpack.c.l.b16 %v174
    %v191 = vunpack.c.l.b16 %v175
    %v192 = vpack.c.b16 %v185, %v184
    %v193 = vpack.c.b16 %v187, %v186
    %v194 = vpack.c.b16 %v189, %v188
    %v195 = vpack.c.b16 %v191, %v190
    %vm200 = vcmask 523264
    %v202 = vsel %vm200, %v165, 0
    %204 = vmatprep.subr.bf16.mxu0 0
    %205 = vmatpush1.bf16.msra.mxu0 %v192
    %206 = vmatprep.subr.bf16.mxu0 0
    %207 = vmatpush1.bf16.msra.mxu0 %v193
    %208 = vmatprep.subr.bf16.mxu0 0
    %209 = vmatpush1.bf16.msra.mxu0 %v194
    %210 = vmatprep.subr.bf16.mxu0 0
    %211 = vmatpush1.bf16.msra.mxu0 %v195
    %212 = vmatprep.subr.bf16.mxu0 0
    %213 = vmatpush1.bf16.msra.mxu0 0
    %214 = vmatprep.subr.bf16.mxu0 0
    %215 = vmatpush1.bf16.msra.mxu0 0
    %216 = vmatprep.subr.bf16.mxu0 0
    %217 = vmatpush1.bf16.msra.mxu0 0
    %218 = vmatprep.subr.bf16.mxu0 0
    %219 = vmatpush1.bf16.msra.mxu0 0
    %220 = vmatprep.subr.bf16.mxu0 0
    %221 = vmatpush1.bf16.msra.mxu0 0
    %222 = vmatprep.subr.bf16.mxu0 0
    %223 = vmatpush1.bf16.msra.mxu0 0
    %224 = vmatprep.subr.bf16.mxu0 0
    %225 = vmatpush1.bf16.msra.mxu0 0
    %226 = vmatprep.subr.bf16.mxu0 0
    %227 = vmatpush1.bf16.msra.mxu0 0
    %228 = vmatprep.subr.bf16.mxu0 0
    %229 = vmatpush1.bf16.msra.mxu0 0
    %230 = vmatprep.subr.bf16.mxu0 0
    %231 = vmatpush1.bf16.msra.mxu0 0
    %232 = vmatprep.subr.bf16.mxu0 0
    %233 = vmatpush1.bf16.msra.mxu0 0
    %234 = vmatprep.subr.bf16.mxu0 0
    %235 = vmatpush1.bf16.msra.mxu0 0
    %236 = vmatprep.mubr.bf16.mxu0 0
    %237 = vmatmul.mubr.bf16.gmra.mrb[0].mxu0 %v202
    %v238 = vpop.f32.mrb[0].mxu0
    %v239 = vadd.f32 0.0, %v238
    %v240 = vpop.f32.mrb[0].mxu0
    %v241 = vpop.f32.mrb[0].mxu0
    %v242 = vadd.f32 0.0, %v241
    %v243 = vpop.f32.mrb[0].mxu0
    %244 = vdwg.mxu0
    %v245 = vadd.f32 %v166, %v239
    %v246 = vadd.f32 %v167, %v242
    %247 = vst.msk [vmem:[#allocation2] sm:$0xff] %vm49, %v245
    %248 = vst.msk [vmem:[#allocation2 + $0x8] sm:$0xff] %vm49, %v246
    // Predicated region
    $region22: #{tpu_custom_call.1} parent=1 // pred_check
      %p249 = pneg %p19
    $region23: #{tpu_custom_call.1} parent=1 // pred_check_branch
      %251 = sbr.rel (%p249) target = $region25
    $region24: #{tpu_custom_call.1} parent=1 // pred_region
      %v252 = vld [vmem:[#allocation2] sm:$0xff]
      %v253 = vld [vmem:[#allocation2 + $0x8] sm:$0xff]
      %254 = vst.msk [vmem:[#allocation3] sm:$0xff] %vm49, %v252
      %255 = vst.msk [vmem:[#allocation3 + $0x8] sm:$0xff] %vm49, %v253
    $region25: #{tpu_custom_call.1} parent=1 // pred_fallthru
      _
    // Predicated region
    $region26: #{tpu_custom_call.1} parent=1 // pred_check
      _
    $region27: #{tpu_custom_call.1} parent=1 // pred_check_branch
      %257 = sbr.rel (0) target = $region29
    $region28: #{tpu_custom_call.1} parent=1 // pred_region
      %s259 = ssub.s32 256, 256
      %260 = vsyncadd [#allocation4], %s259
      %s261 = sshll.u32 [#allocation3], 4
      %s262 = int_to_ptr.vmem [resolvable:$true] %s261
      %267 = dma.vmem_to_hbm [thread:$0]  %s262, 256, %s4, [#allocation4], 128, 128, 8
    $region29: #{tpu_custom_call.1} parent=1 // pred_fallthru
      _
    // Predicated region
    $region30: #{tpu_custom_call.1} parent=1 // pred_check
      _
    $region31: #{tpu_custom_call.1} parent=1 // pred_check_branch
      %269 = sbr.rel (0) target = $region33
    $region32: #{tpu_custom_call.1} parent=1 // pred_region
      %270 = dma.done [#allocation4], 256
    $region33: #{tpu_custom_call.1} parent=1 // pred_fallthru
      _
    %271 = vsyncpa [#allocation4], 1

</llo_original>
